<compile_context>
chip_gen: v6e
topology: v6e:2x2x1
jax: 0.10.0
libtpu: 0.0.40
codegen_flags: <defaults>
</compile_context>

<pallas_src>
import jax
import jax.numpy as jnp
import numpy as np
from jax.experimental import pallas as pl
from jax.experimental.pallas import tpu as pltpu

GENRE_DIM = 32
HIDDEN_DIM = 64
IN_DIM = 1 + GENRE_DIM          # 33
PACK = 2                        # batch rows packed per 128-lane row
PACKED_HIDDEN = PACK * HIDDEN_DIM   # 128
MAX_TB_PACKED = 4096            # packed rows per tile (= 8192 logical rows)


def _round_up(n, m):
    return ((n + m - 1) // m) * m


def _block_diag2(w):
    """(k, n) -> (2k, 2n) block-diagonal [[w, 0], [0, w]] (tiny, wrapper-side)."""
    k, n = w.shape
    z = jnp.zeros((k, n), w.dtype)
    top = jnp.concatenate([w, z], axis=1)
    bot = jnp.concatenate([z, w], axis=1)
    return jnp.concatenate([top, bot], axis=0)


def movie_tower_kernel(r_ref, g_ref, w1r_ref, w1g_ref, b1_ref, w2_ref, b2_ref,
                       o_ref):
    # r_ref:  (TB, 2)    packed ratings   [r_{2p}, r_{2p+1}]
    # g_ref:  (TB, 64)   packed genres    [g_{2p}(32), g_{2p+1}(32)]
    # w1r_ref:(2, 128)   block-diag rating rows of W1
    # w1g_ref:(64, 128)  block-diag genre block of W1
    # b1_ref: (1, 128)   b1 tiled x2
    # w2_ref: (128, 128) block-diag W2
    # b2_ref: (1, 128)   b2 tiled x2
    # o_ref:  (TB, 128)  packed output    [o_{2p}(64), o_{2p+1}(64)]
    g = g_ref[...]
    r = r_ref[...]
    w1r = w1r_ref[...]

    # Layer 1: split matmul replaces cat([rating, genre]) @ W1.
    h = jnp.dot(g, w1g_ref[...], preferred_element_type=jnp.float32)
    # Rating contribution on the VPU: w1r row 0 is [w1_r, 0], row 1 is [0, w1_r],
    # so these two broadcast-muls land each packed row's rating in its own half.
    h = h + r[:, 0:1] * w1r[0:1, :]
    h = h + r[:, 1:2] * w1r[1:2, :]
    h = h + b1_ref[...]
    h = jnp.maximum(h, 0.0)  # ReLU

    # Layer 2.
    o = jnp.dot(h, w2_ref[...], preferred_element_type=jnp.float32) + b2_ref[...]
    o_ref[...] = jnp.maximum(o, 0.0)  # ReLU


def movie_tower_forward(imdb_rating, genre_embedding, params):
    """imdb_rating: (B,1) f32, genre_embedding: (B,32) f32 -> (B,64) f32."""
    w1, b1, w2, b2 = params
    B = imdb_rating.shape[0]
    if B == 0:  # zero-length grid guard
        return jnp.zeros((0, HIDDEN_DIM), jnp.float32)

    # Tiny packed (block-diagonal) weights; activations stay lane-dense (128).
    w1r_bd = _block_diag2(w1[0:1, :])        # (2, 128)
    w1g_bd = _block_diag2(w1[1:, :])         # (64, 128)
    w2_bd = _block_diag2(w2)                 # (128, 128)
    b1_bd = jnp.tile(b1, (1, PACK))          # (1, 128)
    b2_bd = jnp.tile(b2, (1, PACK))          # (1, 128)

    # Packed-row tile: large (amortize ~0.35us/step), but at most half the work
    # (rounded to 8) so >=2 grid steps exist for megacore sharding on v7x.
    rows_packed = -(-B // PACK)
    half = _round_up(-(-rows_packed // 2), 8)
    tb2 = max(8, min(MAX_TB_PACKED, half))
    rows_packed_pad = _round_up(rows_packed, tb2)
    b_pad = rows_packed_pad * PACK

    if b_pad != B:
        pad = b_pad - B
        imdb_rating = jnp.pad(imdb_rating, ((0, pad), (0, 0)))
        genre_embedding = jnp.pad(genre_embedding, ((0, pad), (0, 0)))

    # Row-major reshapes on contiguous arrays: bitcasts, no extra HBM traffic.
    r_packed = imdb_rating.reshape(rows_packed_pad, PACK)               # (R, 2)
    g_packed = genre_embedding.reshape(rows_packed_pad, PACK * GENRE_DIM)  # (R, 64)

    grid = (rows_packed_pad // tb2,)

    weight_bytes = 4 * (w1r_bd.size + w1g_bd.size + b1_bd.size
                        + w2_bd.size + b2_bd.size)
    flops_per_packed_row = 2 * (PACK * GENRE_DIM * PACKED_HIDDEN
                                + PACK * PACKED_HIDDEN
                                + PACKED_HIDDEN * PACKED_HIDDEN)
    cost = pl.CostEstimate(
        flops=rows_packed_pad * flops_per_packed_row,
        transcendentals=0,
        bytes_accessed=rows_packed_pad * (PACK + PACK * GENRE_DIM
                                          + PACKED_HIDDEN) * 4 + weight_bytes,
    )

    out = pl.pallas_call(
        movie_tower_kernel,
        out_shape=jax.ShapeDtypeStruct((rows_packed_pad, PACKED_HIDDEN),
                                       jnp.float32),
        grid=grid,
        in_specs=[
            pl.BlockSpec((tb2, PACK), lambda i: (i, 0)),                    # rating
            pl.BlockSpec((tb2, PACK * GENRE_DIM), lambda i: (i, 0)),        # genre
            pl.BlockSpec((PACK, PACKED_HIDDEN), lambda i: (0, 0)),          # w1 rating rows
            pl.BlockSpec((PACK * GENRE_DIM, PACKED_HIDDEN), lambda i: (0, 0)),  # w1 genre blk
            pl.BlockSpec((1, PACKED_HIDDEN), lambda i: (0, 0)),             # b1
            pl.BlockSpec((PACKED_HIDDEN, PACKED_HIDDEN), lambda i: (0, 0)), # w2
            pl.BlockSpec((1, PACKED_HIDDEN), lambda i: (0, 0)),             # b2
        ],
        out_specs=pl.BlockSpec((tb2, PACKED_HIDDEN), lambda i: (i, 0)),
        compiler_params=pltpu.CompilerParams(
            dimension_semantics=("parallel",),
            vmem_limit_bytes=32 * 1024 * 1024),
        cost_estimate=cost,
    )(r_packed, g_packed, w1r_bd, w1g_bd, b1_bd, w2_bd, b2_bd)

    # Free bitcast back to (b_pad, 64); slice only if we actually padded.
    out = out.reshape(b_pad, HIDDEN_DIM)
    return out[:B] if b_pad != B else out


def init_params(key):
    """Deterministic init matching nn.Linear shapes (weights stored (in, out),
    so the math is x @ W)."""
    k1, k2, k3, k4 = jax.random.split(key, 4)
    lim1 = 1.0 / np.sqrt(IN_DIM)
    lim2 = 1.0 / np.sqrt(HIDDEN_DIM)
    w1 = jax.random.uniform(k1, (IN_DIM, HIDDEN_DIM), jnp.float32, -lim1, lim1)
    b1 = jax.random.uniform(k2, (1, HIDDEN_DIM), jnp.float32, -lim1, lim1)
    w2 = jax.random.uniform(k3, (HIDDEN_DIM, HIDDEN_DIM), jnp.float32, -lim2, lim2)
    b2 = jax.random.uniform(k4, (1, HIDDEN_DIM), jnp.float32, -lim2, lim2)
    return w1, b1, w2, b2


def reference_forward(imdb_rating, genre_embedding, params):
    w1, b1, w2, b2 = params
    x = jnp.concatenate([imdb_rating, genre_embedding], axis=1)
    h = jnp.maximum(x @ w1 + b1, 0.0)
    return jnp.maximum(h @ w2 + b2, 0.0)


if __name__ == "__main__":
    key = jax.random.PRNGKey(0)
    kp, ki, kg = jax.random.split(key, 3)
    params = init_params(kp)

    # Small shapes consistent with the module.
    batch = 8
    imdb_rating = jax.random.uniform(ki, (batch, 1), jnp.float32, 0.0, 10.0)
    genre_embedding = jax.random.normal(kg, (batch, GENRE_DIM), jnp.float32)

    out = movie_tower_forward(imdb_rating, genre_embedding, params)
    out = jax.block_until_ready(out)
    ref = reference_forward(imdb_rating, genre_embedding, params)
    np.testing.assert_allclose(np.asarray(out), np.asarray(ref),
                               rtol=1e-5, atol=1e-5)
    assert out.shape == (batch, HIDDEN_DIM)

    # Second check: odd, non-multiple-of-tile batch exercises padding,
    # row-packing and the multi-step (megacore-friendly) grid path.
    batch2 = 301
    ki2, kg2 = jax.random.split(jax.random.PRNGKey(1), 2)
    r2 = jax.random.uniform(ki2, (batch2, 1), jnp.float32, 0.0, 10.0)
    g2 = jax.random.normal(kg2, (batch2, GENRE_DIM), jnp.float32)
    out2 = jax.block_until_ready(movie_tower_forward(r2, g2, params))
    ref2 = reference_forward(r2, g2, params)
    np.testing.assert_allclose(np.asarray(out2), np.asarray(ref2),
                               rtol=1e-5, atol=1e-5)
    assert out2.shape == (batch2, HIDDEN_DIM)

    print("KERNEL_OK")
</pallas_src>

<mosaic_0001>
module attributes {stable_mosaic.version = 11 : i64} {
  func.func @movie_tower_kernel(%arg0: i32, %arg1: memref<8x2xf32, #tpu.memory_space<vmem>>, %arg2: memref<8x64xf32, #tpu.memory_space<vmem>>, %arg3: memref<2x128xf32, #tpu.memory_space<vmem>>, %arg4: memref<64x128xf32, #tpu.memory_space<vmem>>, %arg5: memref<1x128xf32, #tpu.memory_space<vmem>>, %arg6: memref<128x128xf32, #tpu.memory_space<vmem>>, %arg7: memref<1x128xf32, #tpu.memory_space<vmem>>, %arg8: memref<8x128xf32, #tpu.memory_space<vmem>>) attributes {dimension_semantics = [#tpu.dimension_semantics<parallel>], iteration_bounds = array<i64: 1>, scalar_prefetch = 0 : i64, scratch_operands = 0 : i64, tpu.core_type = #tpu.core_type<tc>, window_params = [{transform_indices = @transform_0, window_bounds = array<i64: 8, 2>}, {transform_indices = @transform_1, window_bounds = array<i64: 8, 64>}, {pipeline_mode = #tpu.pipeline_mode<synchronous>, transform_indices = @transform_2, window_bounds = array<i64: 2, 128>}, {pipeline_mode = #tpu.pipeline_mode<synchronous>, transform_indices = @transform_3, window_bounds = array<i64: 64, 128>}, {pipeline_mode = #tpu.pipeline_mode<synchronous>, transform_indices = @transform_4, window_bounds = array<i64: 1, 128>}, {pipeline_mode = #tpu.pipeline_mode<synchronous>, transform_indices = @transform_5, window_bounds = array<i64: 128, 128>}, {pipeline_mode = #tpu.pipeline_mode<synchronous>, transform_indices = @transform_6, window_bounds = array<i64: 1, 128>}, {transform_indices = @transform_7, window_bounds = array<i64: 8, 128>}]} {
    %c0 = arith.constant 0 : index
    %c0_0 = arith.constant 0 : index
    %0 = vector.load %arg2[%c0, %c0_0] : memref<8x64xf32, #tpu.memory_space<vmem>>, vector<8x64xf32>
    %c0_1 = arith.constant 0 : index
    %c0_2 = arith.constant 0 : index
    %1 = vector.load %arg1[%c0_1, %c0_2] : memref<8x2xf32, #tpu.memory_space<vmem>>, vector<8x2xf32>
    %c0_3 = arith.constant 0 : index
    %c0_4 = arith.constant 0 : index
    %2 = vector.load %arg3[%c0_3, %c0_4] : memref<2x128xf32, #tpu.memory_space<vmem>>, vector<2x128xf32>
    %c0_5 = arith.constant 0 : index
    %c0_6 = arith.constant 0 : index
    %3 = vector.load %arg4[%c0_5, %c0_6] : memref<64x128xf32, #tpu.memory_space<vmem>>, vector<64x128xf32>
    %cst = arith.constant dense<0.000000e+00> : vector<8x128xf32>
    %4 = tpu.matmul %0, %3, %cst {dimension_numbers = #tpu.dot_dimension_numbers<[1], [0], [0], [1], [0, 0, 1, 1], [], []>} : vector<8x64xf32>, vector<64x128xf32>, vector<8x128xf32> -> vector<8x128xf32>
    %5 = vector.extract_strided_slice %1 {offsets = [0, 0], sizes = [8, 1], strides = [1, 1]} : vector<8x2xf32> to vector<8x1xf32>
    %6 = vector.extract_strided_slice %2 {offsets = [0, 0], sizes = [1, 128], strides = [1, 1]} : vector<2x128xf32> to vector<1x128xf32>
    %7 = vector.broadcast %5 : vector<8x1xf32> to vector<8x128xf32>
    %8 = vector.broadcast %6 : vector<1x128xf32> to vector<8x128xf32>
    %9 = arith.mulf %7, %8 : vector<8x128xf32>
    %10 = arith.addf %4, %9 : vector<8x128xf32>
    %11 = vector.extract_strided_slice %1 {offsets = [0, 1], sizes = [8, 1], strides = [1, 1]} : vector<8x2xf32> to vector<8x1xf32>
    %12 = vector.extract_strided_slice %2 {offsets = [1, 0], sizes = [1, 128], strides = [1, 1]} : vector<2x128xf32> to vector<1x128xf32>
    %13 = vector.broadcast %11 : vector<8x1xf32> to vector<8x128xf32>
    %14 = vector.broadcast %12 : vector<1x128xf32> to vector<8x128xf32>
    %15 = arith.mulf %13, %14 : vector<8x128xf32>
    %16 = arith.addf %10, %15 : vector<8x128xf32>
    %c0_7 = arith.constant 0 : index
    %c0_8 = arith.constant 0 : index
    %17 = vector.load %arg5[%c0_7, %c0_8] : memref<1x128xf32, #tpu.memory_space<vmem>>, vector<1x128xf32>
    %18 = vector.broadcast %17 : vector<1x128xf32> to vector<8x128xf32>
    %19 = arith.addf %16, %18 : vector<8x128xf32>
    %cst_9 = arith.constant 0.000000e+00 : f32
    %20 = vector.broadcast %cst_9 : f32 to vector<8x128xf32>
    %21 = arith.maximumf %19, %20 : vector<8x128xf32>
    %c0_10 = arith.constant 0 : index
    %c0_11 = arith.constant 0 : index
    %22 = vector.load %arg6[%c0_10, %c0_11] : memref<128x128xf32, #tpu.memory_space<vmem>>, vector<128x128xf32>
    %cst_12 = arith.constant dense<0.000000e+00> : vector<8x128xf32>
    %23 = tpu.matmul %21, %22, %cst_12 {dimension_numbers = #tpu.dot_dimension_numbers<[1], [0], [0], [1], [0, 0, 1, 1], [], []>} : vector<8x128xf32>, vector<128x128xf32>, vector<8x128xf32> -> vector<8x128xf32>
    %c0_13 = arith.constant 0 : index
    %c0_14 = arith.constant 0 : index
    %24 = vector.load %arg7[%c0_13, %c0_14] : memref<1x128xf32, #tpu.memory_space<vmem>>, vector<1x128xf32>
    %25 = vector.broadcast %24 : vector<1x128xf32> to vector<8x128xf32>
    %26 = arith.addf %23, %25 : vector<8x128xf32>
    %cst_15 = arith.constant 0.000000e+00 : f32
    %27 = vector.broadcast %cst_15 : f32 to vector<8x128xf32>
    %28 = arith.maximumf %26, %27 : vector<8x128xf32>
    %c0_16 = arith.constant 0 : index
    %c0_17 = arith.constant 0 : index
    %29 = vector.load %arg8[%c0_16, %c0_17] : memref<8x128xf32, #tpu.memory_space<vmem>>, vector<8x128xf32>
    tpu.vector_store %arg8[%c0_16, %c0_17], %28 {strides = array<i32>} : memref<8x128xf32, #tpu.memory_space<vmem>>, vector<8x128xf32>,
    return
  }
  func.func @transform_0(%arg0: i32) -> (i32, i32) {
    %c0_i32 = arith.constant 0 : i32
    %c0_i32_0 = arith.constant 0 : i32
    return %arg0, %c0_i32 : i32, i32
  }
  func.func @transform_1(%arg0: i32) -> (i32, i32) {
    %c0_i32 = arith.constant 0 : i32
    %c0_i32_0 = arith.constant 0 : i32
    return %arg0, %c0_i32 : i32, i32
  }
  func.func @transform_2(%arg0: i32) -> (i32, i32) {
    %c0_i32 = arith.constant 0 : i32
    %c0_i32_0 = arith.constant 0 : i32
    %c0_i32_1 = arith.constant 0 : i32
    return %c0_i32, %c0_i32_0 : i32, i32
  }
  func.func @transform_3(%arg0: i32) -> (i32, i32) {
    %c0_i32 = arith.constant 0 : i32
    %c0_i32_0 = arith.constant 0 : i32
    %c0_i32_1 = arith.constant 0 : i32
    return %c0_i32, %c0_i32_0 : i32, i32
  }
  func.func @transform_4(%arg0: i32) -> (i32, i32) {
    %c0_i32 = arith.constant 0 : i32
    %c0_i32_0 = arith.constant 0 : i32
    %c0_i32_1 = arith.constant 0 : i32
    return %c0_i32, %c0_i32_0 : i32, i32
  }
  func.func @transform_5(%arg0: i32) -> (i32, i32) {
    %c0_i32 = arith.constant 0 : i32
    %c0_i32_0 = arith.constant 0 : i32
    %c0_i32_1 = arith.constant 0 : i32
    return %c0_i32, %c0_i32_0 : i32, i32
  }
  func.func @transform_6(%arg0: i32) -> (i32, i32) {
    %c0_i32 = arith.constant 0 : i32
    %c0_i32_0 = arith.constant 0 : i32
    %c0_i32_1 = arith.constant 0 : i32
    return %c0_i32, %c0_i32_0 : i32, i32
  }
  func.func @transform_7(%arg0: i32) -> (i32, i32) {
    %c0_i32 = arith.constant 0 : i32
    %c0_i32_0 = arith.constant 0 : i32
    return %arg0, %c0_i32 : i32, i32
  }
}

</mosaic_0001>

<llo_original>
// kernel: tpu_custom_call.1
$region0: #{tpu_custom_call.1}
  #allocation0 [shape = 'u32[]', space=smem, size = 0x4, offset = 0x4, fixed_abs, tag = 'smem constant byte address 0x4 - core index']
  #allocation1 [shape = 'u32[144,128]{1,0:T(1,128)}', space=vmem, size = 0x12000, scoped, tag = 'internal scratch']
  %s0 = inlined_call_operand.vmem [shape: f32[8,2], index: 0, kind: input, shape index: {}]
  %s1 = inlined_call_operand.vmem [shape: f32[8,64], index: 1, kind: input, shape index: {}]
  %s2 = inlined_call_operand.vmem [shape: f32[2,128], index: 2, kind: input, shape index: {}]
  %s3 = inlined_call_operand.hbm [shape: f32[64,128], index: 3, kind: input, shape index: {}]
  %s4 = inlined_call_operand.vmem [shape: f32[1,128], index: 4, kind: input, shape index: {}]
  %s5 = inlined_call_operand.hbm [shape: f32[128,128], index: 5, kind: input, shape index: {}]
  %s6 = inlined_call_operand.vmem [shape: f32[1,128], index: 6, kind: input, shape index: {}]
  %s7 = inlined_call_operand.hbm [shape: f32[8,128], index: 7, kind: output, shape index: {}]
  %s8 = sld [smem:[#allocation0]]
  $region46: #{tpu_custom_call.1} parent=0
    _
  %s10 = ssub.s32 1, %s8
  %s11 = scalar_select 0, %s10, %s8
  $region1: #{tpu_custom_call.1} parent=0
    #allocation2 [shape = 'u8[32768]{0}', space=vmem, size = 0x8000, scoped, tag = 'input window, operand 3, single buffered']
    #allocation3 [shape = 's32[1]{0}', space=sflag, size = 0x4, scoped, tag = 'scoped memory for tpu_custom_call.1']
    #allocation4 [shape = 's32[1]{0}', space=sflag, size = 0x4, scoped, tag = 'scoped memory for tpu_custom_call.1']
    #allocation5 [shape = 'u8[65536]{0}', space=vmem, size = 0x10000, scoped, tag = 'input window, operand 5, single buffered']
    #allocation6 [shape = 's32[1]{0}', space=sflag, size = 0x4, scoped, tag = 'scoped memory for tpu_custom_call.1']
    #allocation7 [shape = 'u8[4096]{0}', space=vmem, size = 0x1000, scoped, tag = 'output window, operand 0, single buffered']
    %12 = vsyncpa [#allocation3], 0
    %13 = vsyncpa [#allocation6], 0
    %14 = vsyncpa [#allocation4], 0
    // Predicated region
    $region2: #{tpu_custom_call.1} parent=1 // pred_check
      _
    $region3: #{tpu_custom_call.1} parent=1 // pred_check_branch
      %16 = sbr.rel (0) target = $region5
    $region4: #{tpu_custom_call.1} parent=1 // pred_region
      _
    $region5: #{tpu_custom_call.1} parent=1 // pred_fallthru
      _
    // Predicated region
    $region6: #{tpu_custom_call.1} parent=1 // pred_check
      _
    $region7: #{tpu_custom_call.1} parent=1 // pred_check_branch
      %18 = sbr.rel (0) target = $region9
    $region8: #{tpu_custom_call.1} parent=1 // pred_region
      _
    $region9: #{tpu_custom_call.1} parent=1 // pred_fallthru
      _
    // Predicated region
    $region10: #{tpu_custom_call.1} parent=1 // pred_check
      _
    $region11: #{tpu_custom_call.1} parent=1 // pred_check_branch
      %20 = sbr.rel (0) target = $region13
    $region12: #{tpu_custom_call.1} parent=1 // pred_region
      _
    $region13: #{tpu_custom_call.1} parent=1 // pred_fallthru
      _
    // Predicated region
    $region14: #{tpu_custom_call.1} parent=1 // pred_check
      _
    $region15: #{tpu_custom_call.1} parent=1 // pred_check_branch
      %22 = sbr.rel (0) target = $region17
    $region16: #{tpu_custom_call.1} parent=1 // pred_region
      %s24 = ssub.s32 1024, 1024
      %25 = vsyncadd [#allocation3], %s24
      %s26 = sshll.u32 [#allocation2], 4
      %s27 = int_to_ptr.vmem [resolvable:$true] %s26
      %32 = dma.hbm_to_vmem [thread:$0]  %s3, 1024, %s27, [#allocation3], 128, 128, 8
    $region17: #{tpu_custom_call.1} parent=1 // pred_fallthru
      _
    // Predicated region
    $region18: #{tpu_custom_call.1} parent=1 // pred_check
      _
    $region19: #{tpu_custom_call.1} parent=1 // pred_check_branch
      %34 = sbr.rel (0) target = $region21
    $region20: #{tpu_custom_call.1} parent=1 // pred_region
      _
    $region21: #{tpu_custom_call.1} parent=1 // pred_fallthru
      _
    // Predicated region
    $region22: #{tpu_custom_call.1} parent=1 // pred_check
      _
    $region23: #{tpu_custom_call.1} parent=1 // pred_check_branch
      %36 = sbr.rel (0) target = $region25
    $region24: #{tpu_custom_call.1} parent=1 // pred_region
      %s38 = ssub.s32 2048, 2048
      %39 = vsyncadd [#allocation6], %s38
      %s40 = sshll.u32 [#allocation5], 4
      %s41 = int_to_ptr.vmem [resolvable:$true] %s40
      %46 = dma.hbm_to_vmem [thread:$0]  %s5, 2048, %s41, [#allocation6], 128, 128, 8
    $region25: #{tpu_custom_call.1} parent=1 // pred_fallthru
      _
    // Predicated region
    $region26: #{tpu_custom_call.1} parent=1 // pred_check
      _
    $region27: #{tpu_custom_call.1} parent=1 // pred_check_branch
      %48 = sbr.rel (0) target = $region29
    $region28: #{tpu_custom_call.1} parent=1 // pred_region
      _
    $region29: #{tpu_custom_call.1} parent=1 // pred_fallthru
      _
    // Predicated region
    $region30: #{tpu_custom_call.1} parent=1 // pred_check
      _
    $region31: #{tpu_custom_call.1} parent=1 // pred_check_branch
      %50 = sbr.rel (0) target = $region33
    $region32: #{tpu_custom_call.1} parent=1 // pred_region
      %51 = dma.done [#allocation3], 1024
    $region33: #{tpu_custom_call.1} parent=1 // pred_fallthru
      _
    // Predicated region
    $region34: #{tpu_custom_call.1} parent=1 // pred_check
      _
    $region35: #{tpu_custom_call.1} parent=1 // pred_check_branch
      %53 = sbr.rel (0) target = $region37
    $region36: #{tpu_custom_call.1} parent=1 // pred_region
      %54 = dma.done [#allocation6], 2048
    $region37: #{tpu_custom_call.1} parent=1 // pred_fallthru
      _
    %v55 = vld [vmem:[%s1] sm:$0xff]
    %v56 = vld [vmem:[%s0] sm:$0xff]
    %v57 = vld [vmem:[%s2] sm:$0x3]
    %v58 = vld [vmem:[#allocation2] sm:$0xff]
    %v59 = vld [vmem:[#allocation2 + $0x8] sm:$0xff]
    %v60 = vld [vmem:[#allocation2 + $0x10] sm:$0xff]
    %v61 = vld [vmem:[#allocation2 + $0x18] sm:$0xff]
    %v62 = vld [vmem:[#allocation2 + $0x20] sm:$0xff]
    %v63 = vld [vmem:[#allocation2 + $0x28] sm:$0xff]
    %v64 = vld [vmem:[#allocation2 + $0x30] sm:$0xff]
    %v65 = vld [vmem:[#allocation2 + $0x38] sm:$0xff]
    %67 = vset.pattern.permute.xlu0 0
    %68 = vperm.xlu0 %67, %v56
    %v69 = vpop.permute.xlu0 %68
    %v71 = vlaneseq
    %v72 = vshrl.u32 %v71, 7
    %v73 = vsub.s32 0, %v72
    %v74 = vrot.slane %v57, %v73
    %v75 = vmul.f32 %v69, %v74
    %vm76 = vcmask 523264
    %v78 = vsel %vm76, %v55, 0
    %80 = vmatprep.subr.mxu0 0.0
    %81 = vmatpush1.msra.mxu0 0.0
    %82 = vmatprep.subr.mxu0 0.0
    %83 = vmatpush1.msra.mxu0 0.0
    %84 = vmatprep.subr.mxu0 0.0
    %85 = vmatpush1.msra.mxu0 0.0
    %86 = vmatprep.subr.mxu0 0.0
    %87 = vmatpush1.msra.mxu0 0.0
    %88 = vmatprep.subr.mxu0 0.0
    %89 = vmatpush1.msra.mxu0 0.0
    %90 = vmatprep.subr.mxu0 0.0
    %91 = vmatpush1.msra.mxu0 0.0
    %92 = vmatprep.subr.mxu0 0.0
    %93 = vmatpush1.msra.mxu0 0.0
    %94 = vmatprep.subr.mxu0 0.0
    %95 = vmatpush1.msra.mxu0 0.0
    %96 = vmatprep.subr.mxu0 0.0
    %97 = vmatpush1.msra.mxu0 %v65
    %98 = vmatprep.subr.mxu0 0.0
    %99 = vmatpush1.msra.mxu0 %v64
    %100 = vmatprep.subr.mxu0 0.0
    %101 = vmatpush1.msra.mxu0 %v63
    %102 = vmatprep.subr.mxu0 0.0
    %103 = vmatpush1.msra.mxu0 %v62
    %104 = vmatprep.subr.mxu0 0.0
    %105 = vmatpush1.msra.mxu0 %v61
    %106 = vmatprep.subr.mxu0 0.0
    %107 = vmatpush1.msra.mxu0 %v60
    %108 = vmatprep.subr.mxu0 0.0
    %109 = vmatpush1.msra.mxu0 %v59
    %110 = vmatprep.subr.mxu0 0.0
    %111 = vmatpush1.msra.mxu0 %v58
    %112 = vmatprep.subr.mxu0 0.0
    %113 = vmatpush2.msra.mxu0 0.0
    %114 = vmatprep.subr.mxu0 0.0
    %115 = vmatpush2.msra.mxu0 0.0
    %116 = vmatprep.subr.mxu0 0.0
    %117 = vmatpush2.msra.mxu0 0.0
    %118 = vmatprep.subr.mxu0 0.0
    %119 = vmatpush2.msra.mxu0 0.0
    %120 = vmatprep.subr.mxu0 0.0
    %121 = vmatpush2.msra.mxu0 0.0
    %122 = vmatprep.subr.mxu0 0.0
    %123 = vmatpush2.msra.mxu0 0.0
    %124 = vmatprep.subr.mxu0 0.0
    %125 = vmatpush2.msra.mxu0 0.0
    %126 = vmatprep.subr.mxu0 0.0
    %127 = vmatpush2.msra.mxu0 0.0
    %128 = vmatprep.subr.mxu0 0.0
    %129 = vmatpush2.msra.mxu0 0.0
    %130 = vmatprep.subr.mxu0 0.0
    %131 = vmatpush2.msra.mxu0 0.0
    %132 = vmatprep.subr.mxu0 0.0
    %133 = vmatpush2.msra.mxu0 0.0
    %134 = vmatprep.subr.mxu0 0.0
    %135 = vmatpush2.msra.mxu0 0.0
    %136 = vmatprep.subr.mxu0 0.0
    %137 = vmatpush2.msra.mxu0 0.0
    %138 = vmatprep.subr.mxu0 0.0
    %139 = vmatpush2.msra.mxu0 0.0
    %140 = vmatprep.subr.mxu0 0.0
    %141 = vmatpush2.msra.mxu0 0.0
    %142 = vmatprep.subr.mxu0 0.0
    %143 = vmatpush2.msra.mxu0 0.0
    %144 = vmatprep.mubr.f32.mxu0 0.0
    %145 = vmatmul.mubr.f32.gmra.mxu0 %v78
    %v146 = vpop.f32.mrf.mxu0
    %v147 = vadd.f32 %v75, %v146
    %v148 = vpop.f32.mrf.mxu0
    %149 = vdwg.mxu0
    %150 = vset.pattern.permute.xlu0 1
    %151 = vperm.xlu0 %150, %v56
    %v152 = vpop.permute.xlu0 %151
    %v154 = vlaneseq
    %v155 = vshrl.u32 %v154, 7
    %v156 = vsub.s32 1, %v155
    %v157 = vrot.slane %v57, %v156
    %v158 = vmul.f32 %v152, %v157
    %v159 = vadd.f32 %v147, %v158
    %v160 = vld [vmem:[%s4] sm:$0x1]
    %v162 = vlaneseq
    %v163 = vshrl.u32 %v162, 7
    %v164 = vsub.s32 0, %v163
    %v165 = vrot.slane %v160, %v164
    %v167 = vadd.f32 %v159, %v165
    %v168 = vmax.f32 %v167, 0.0
    %v169 = vld [vmem:[#allocation5] sm:$0xff]
    %v170 = vld [vmem:[#allocation5 + $0x8] sm:$0xff]
    %v171 = vld [vmem:[#allocation5 + $0x10] sm:$0xff]
    %v172 = vld [vmem:[#allocation5 + $0x18] sm:$0xff]
    %v173 = vld [vmem:[#allocation5 + $0x20] sm:$0xff]
    %v174 = vld [vmem:[#allocation5 + $0x28] sm:$0xff]
    %v175 = vld [vmem:[#allocation5 + $0x30] sm:$0xff]
    %v176 = vld [vmem:[#allocation5 + $0x38] sm:$0xff]
    %v177 = vld [vmem:[#allocation5 + $0x40] sm:$0xff]
    %v178 = vld [vmem:[#allocation5 + $0x48] sm:$0xff]
    %v179 = vld [vmem:[#allocation5 + $0x50] sm:$0xff]
    %v180 = vld [vmem:[#allocation5 + $0x58] sm:$0xff]
    %v181 = vld [vmem:[#allocation5 + $0x60] sm:$0xff]
    %v182 = vld [vmem:[#allocation5 + $0x68] sm:$0xff]
    %v183 = vld [vmem:[#allocation5 + $0x70] sm:$0xff]
    %v184 = vld [vmem:[#allocation5 + $0x78] sm:$0xff]
    %v185 = vld [vmem:[%s6] sm:$0x1]
    %v187 = vlaneseq
    %v188 = vshrl.u32 %v187, 7
    %v189 = vsub.s32 0, %v188
    %v190 = vrot.slane %v185, %v189
    %192 = vmatprep.subr.mxu0 0.0
    %193 = vmatpush1.msra.mxu0 %v184
    %194 = vmatprep.subr.mxu0 0.0
    %195 = vmatpush1.msra.mxu0 %v183
    %196 = vmatprep.subr.mxu0 0.0
    %197 = vmatpush1.msra.mxu0 %v182
    %198 = vmatprep.subr.mxu0 0.0
    %199 = vmatpush1.msra.mxu0 %v181
    %200 = vmatprep.subr.mxu0 0.0
    %201 = vmatpush1.msra.mxu0 %v180
    %202 = vmatprep.subr.mxu0 0.0
    %203 = vmatpush1.msra.mxu0 %v179
    %204 = vmatprep.subr.mxu0 0.0
    %205 = vmatpush1.msra.mxu0 %v178
    %206 = vmatprep.subr.mxu0 0.0
    %207 = vmatpush1.msra.mxu0 %v177
    %208 = vmatprep.subr.mxu0 0.0
    %209 = vmatpush1.msra.mxu0 %v176
    %210 = vmatprep.subr.mxu0 0.0
    %211 = vmatpush1.msra.mxu0 %v175
    %212 = vmatprep.subr.mxu0 0.0
    %213 = vmatpush1.msra.mxu0 %v174
    %214 = vmatprep.subr.mxu0 0.0
    %215 = vmatpush1.msra.mxu0 %v173
    %216 = vmatprep.subr.mxu0 0.0
    %217 = vmatpush1.msra.mxu0 %v172
    %218 = vmatprep.subr.mxu0 0.0
    %219 = vmatpush1.msra.mxu0 %v171
    %220 = vmatprep.subr.mxu0 0.0
    %221 = vmatpush1.msra.mxu0 %v170
    %222 = vmatprep.subr.mxu0 0.0
    %223 = vmatpush1.msra.mxu0 %v169
    %224 = vmatprep.subr.mxu0 0.0
    %225 = vmatpush2.msra.mxu0 0.0
    %226 = vmatprep.subr.mxu0 0.0
    %227 = vmatpush2.msra.mxu0 0.0
    %228 = vmatprep.subr.mxu0 0.0
    %229 = vmatpush2.msra.mxu0 0.0
    %230 = vmatprep.subr.mxu0 0.0
    %231 = vmatpush2.msra.mxu0 0.0
    %232 = vmatprep.subr.mxu0 0.0
    %233 = vmatpush2.msra.mxu0 0.0
    %234 = vmatprep.subr.mxu0 0.0
    %235 = vmatpush2.msra.mxu0 0.0
    %236 = vmatprep.subr.mxu0 0.0
    %237 = vmatpush2.msra.mxu0 0.0
    %238 = vmatprep.subr.mxu0 0.0
    %239 = vmatpush2.msra.mxu0 0.0
    %240 = vmatprep.subr.mxu0 0.0
    %241 = vmatpush2.msra.mxu0 0.0
    %242 = vmatprep.subr.mxu0 0.0
    %243 = vmatpush2.msra.mxu0 0.0
    %244 = vmatprep.subr.mxu0 0.0
    %245 = vmatpush2.msra.mxu0 0.0
    %246 = vmatprep.subr.mxu0 0.0
    %247 = vmatpush2.msra.mxu0 0.0
    %248 = vmatprep.subr.mxu0 0.0
    %249 = vmatpush2.msra.mxu0 0.0
    %250 = vmatprep.subr.mxu0 0.0
    %251 = vmatpush2.msra.mxu0 0.0
    %252 = vmatprep.subr.mxu0 0.0
    %253 = vmatpush2.msra.mxu0 0.0
    %254 = vmatprep.subr.mxu0 0.0
    %255 = vmatpush2.msra.mxu0 0.0
    %256 = vmatprep.mubr.f32.mxu0 0.0
    %257 = vmatmul.mubr.f32.gmra.mxu0 %v168
    %v258 = vpop.f32.mrf.mxu0
    %v259 = vadd.f32 %v190, %v258
    %v260 = vpop.f32.mrf.mxu0
    %261 = vdwg.mxu0
    %v262 = vmax.f32 %v259, 0.0
    %263 = vst [vmem:[#allocation7] sm:$0xff] %v262
    // Predicated region
    $region38: #{tpu_custom_call.1} parent=1 // pred_check
      _
    $region39: #{tpu_custom_call.1} parent=1 // pred_check_branch
      %265 = sbr.rel (0) target = $region41
    $region40: #{tpu_custom_call.1} parent=1 // pred_region
      %s267 = ssub.s32 128, 128
      %268 = vsyncadd [#allocation4], %s267
      %s270 = sshll.u32 [#allocation7], 4
      %s271 = int_to_ptr.vmem [resolvable:$true] %s270
      %273 = dma.vmem_to_hbm [thread:$0]  %s271, 128, %s7, [#allocation4]
    $region41: #{tpu_custom_call.1} parent=1 // pred_fallthru
      _
    // Predicated region
    $region42: #{tpu_custom_call.1} parent=1 // pred_check
      _
    $region43: #{tpu_custom_call.1} parent=1 // pred_check_branch
      %275 = sbr.rel (0) target = $region45
    $region44: #{tpu_custom_call.1} parent=1 // pred_region
      %276 = dma.done [#allocation4], 128
    $region45: #{tpu_custom_call.1} parent=1 // pred_fallthru
      _
    %277 = vsyncpa [#allocation3], 1
    %278 = vsyncpa [#allocation6], 1
    %279 = vsyncpa [#allocation4], 1

</llo_original>
